<compile_context>
chip_gen: v5e
topology: v5e:2x2
jax: 0.10.0
libtpu: 0.0.40
codegen_flags: <defaults>
</compile_context>

<pallas_src>
import jax
import jax.numpy as jnp
from jax.experimental import pallas as pl
from jax.experimental.pallas import tpu as pltpu


def spatial_attention_kernel(w_ref, x_ref, o_ref):
    # w_ref: SMEM (18,) = Conv2d(2,1,3,3) weight, flattened [c, kh, kw]
    # x_ref: VMEM (TB, C, H, W) input block
    # o_ref: VMEM (TB, H, W)   output block (channel dim squeezed in wrapper)
    x = x_ref[...].astype(jnp.float32)            # (TB, C, H, W)

    # --- channel-wise mean and max (reduction over leading axis C) ---
    avg = jnp.mean(x, axis=1)                     # (TB, H, W)
    mx = jnp.max(x, axis=1)                       # (TB, H, W)

    tb, hh, ww = avg.shape
    # Row / column index masks for zero-padding the 3x3 conv boundaries.
    row = jax.lax.broadcasted_iota(jnp.int32, (tb, hh, ww), 1)
    col = jax.lax.broadcasted_iota(jnp.int32, (tb, hh, ww), 2)

    def shift(a, dy, dx):
        # s[i, j] = a[i + dy, j + dx], zero outside the (H, W) extent.
        s = a
        if dy != 0:
            s = pltpu.roll(s, (-dy) % hh, axis=1)          # XLU sublane rotate
            s = jnp.where(row == (0 if dy < 0 else hh - 1), 0.0, s)
        if dx != 0:
            s = pltpu.roll(s, (-dx) % ww, axis=2)          # XLU lane rotate
            s = jnp.where(col == (0 if dx < 0 else ww - 1), 0.0, s)
        return s

    # --- 3x3 cross-correlation over the 2-channel [avg, max] stack ---
    acc = jnp.zeros((tb, hh, ww), jnp.float32)
    for di in range(3):
        for dj in range(3):
            w_avg = w_ref[0 * 9 + di * 3 + dj]             # channel 0: avg
            w_max = w_ref[1 * 9 + di * 3 + dj]             # channel 1: max
            acc = acc + w_avg * shift(avg, di - 1, dj - 1)
            acc = acc + w_max * shift(mx, di - 1, dj - 1)

    o_ref[...] = acc.astype(o_ref.dtype)


def spatial_attention(x, conv_w, *, block_bytes=2 << 20):
    """x: (B, C, H, W) float; conv_w: (1, 2, 3, 3) Conv2d weight (no bias)."""
    B, C, H, W = x.shape
    assert conv_w.shape == (1, 2, 3, 3), "kernel_size=3 variant implemented"
    w_flat = conv_w.reshape(-1).astype(jnp.float32)        # (18,) -> SMEM

    # Batch tile: largest TB whose input block fits the byte budget, but keep
    # >= 2 grid steps when possible (megacore sharding + DMA/compute overlap).
    bytes_per_ex = C * H * W * x.dtype.itemsize
    tb = max(1, min(B, block_bytes // max(bytes_per_ex, 1)))
    if B >= 2:
        tb = min(tb, max(1, B // 2))
    grid = (pl.cdiv(B, tb),)

    out = pl.pallas_call(
        spatial_attention_kernel,
        out_shape=jax.ShapeDtypeStruct((B, H, W), x.dtype),
        grid=grid,
        in_specs=[
            pl.BlockSpec(memory_space=pltpu.SMEM),                   # weights
            pl.BlockSpec((tb, C, H, W), lambda b: (b, 0, 0, 0)),     # x block
        ],
        out_specs=pl.BlockSpec((tb, H, W), lambda b: (b, 0, 0)),
        compiler_params=pltpu.CompilerParams(
            dimension_semantics=("parallel",),
            # Safe on every generation (v7x physical VMEM is only 64 MiB);
            # blocks are sized so 2x(in)+2x(out)+intermediates stay well under.
            vmem_limit_bytes=32 * 1024 * 1024,
        ),
    )(w_flat, x)
    return out.reshape(B, 1, H, W)


def spatial_attention_ref(x, conv_w):
    """Plain-JAX reference (matches PyTorch cross-correlation semantics)."""
    avg = jnp.mean(x, axis=1, keepdims=True)
    mx = jnp.max(x, axis=1, keepdims=True)
    s = jnp.concatenate([avg, mx], axis=1)                  # (B, 2, H, W)
    return jax.lax.conv_general_dilated(
        s, conv_w, window_strides=(1, 1), padding=((1, 1), (1, 1)),
        dimension_numbers=("NCHW", "OIHW", "NCHW"))


if __name__ == "__main__":
    key = jax.random.PRNGKey(0)
    kx, kw = jax.random.split(key)

    B, C, H, W = 2, 4, 16, 16
    x = jax.random.normal(kx, (B, C, H, W), dtype=jnp.float32)

    # Deterministic Conv2d(2, 1, 3, bias=False) init, mimicking PyTorch's
    # kaiming-uniform bound 1/sqrt(fan_in) with fan_in = 2*3*3.
    bound = 1.0 / (2.0 * 3.0 * 3.0) ** 0.5
    conv_w = jax.random.uniform(kw, (1, 2, 3, 3), dtype=jnp.float32,
                                minval=-bound, maxval=bound)

    out = spatial_attention(x, conv_w)
    out = jax.block_until_ready(out)

    ref = spatial_attention_ref(x, conv_w)
    assert out.shape == (B, 1, H, W)
    assert jnp.allclose(out, ref, atol=1e-5, rtol=1e-5), "mismatch vs reference"

    print("KERNEL_OK")
</pallas_src>

<mosaic_0001>
module attributes {stable_mosaic.version = 11 : i64} {
  func.func @spatial_attention_kernel(%arg0: i32, %arg1: memref<18xf32, #tpu.memory_space<smem>>, %arg2: memref<1x4x16x16xf32, #tpu.memory_space<vmem>>, %arg3: memref<1x16x16xf32, #tpu.memory_space<vmem>>) attributes {dimension_semantics = [#tpu.dimension_semantics<parallel>], iteration_bounds = array<i64: 2>, scalar_prefetch = 0 : i64, scratch_operands = 0 : i64, tpu.core_type = #tpu.core_type<tc>, window_params = [{transform_indices = @transform_0, window_bounds = array<i64: 18>}, {transform_indices = @transform_1, window_bounds = array<i64: 1, 4, 16, 16>}, {transform_indices = @transform_2, window_bounds = array<i64: 1, 16, 16>}]} {
    %c0 = arith.constant 0 : index
    %c0_0 = arith.constant 0 : index
    %c0_1 = arith.constant 0 : index
    %c0_2 = arith.constant 0 : index
    %0 = vector.load %arg2[%c0, %c0_0, %c0_1, %c0_2] : memref<1x4x16x16xf32, #tpu.memory_space<vmem>>, vector<1x4x16x16xf32>
    %cst = arith.constant dense<0.000000e+00> : vector<1x16x16xf32>
    %1 = vector.multi_reduction <add>, %0, %cst [1] : vector<1x4x16x16xf32> to vector<1x16x16xf32>
    %cst_3 = arith.constant 4.000000e+00 : f32
    %2 = vector.broadcast %cst_3 : f32 to vector<1x16x16xf32>
    %3 = arith.divf %1, %2 : vector<1x16x16xf32>
    %cst_4 = arith.constant dense<0xFF800000> : vector<1x16x16xf32>
    %4 = vector.multi_reduction <maximumf>, %0, %cst_4 [1] : vector<1x4x16x16xf32> to vector<1x16x16xf32>
    %5 = tpu.iota {dimensions = array<i32: 1>} : vector<1x16x16xi32>
    %6 = tpu.iota {dimensions = array<i32: 2>} : vector<1x16x16xi32>
    %cst_5 = arith.constant 0.000000e+00 : f32
    %7 = vector.broadcast %cst_5 : f32 to vector<1x16x16xf32>
    %c0_6 = arith.constant 0 : index
    %8 = memref.load %arg1[%c0_6] : memref<18xf32, #tpu.memory_space<smem>>
    %c9 = arith.constant 9 : index
    %9 = memref.load %arg1[%c9] : memref<18xf32, #tpu.memory_space<smem>>
    %c1_i32 = arith.constant 1 : i32
    %10 = tpu.dynamic_rotate %3 by %c1_i32 dim 1 : vector<1x16x16xf32>, i32 -> vector<1x16x16xf32>
    %c0_i32 = arith.constant 0 : i32
    %11 = vector.broadcast %c0_i32 : i32 to vector<1x16x16xi32>
    %12 = arith.cmpi eq, %5, %11 : vector<1x16x16xi32>
    %cst_7 = arith.constant 0.000000e+00 : f32
    %13 = vector.broadcast %cst_7 : f32 to vector<1x16x16xf32>
    %14 = arith.select %12, %13, %10 : vector<1x16x16xi1>, vector<1x16x16xf32>
    %c1_i32_8 = arith.constant 1 : i32
    %15 = tpu.dynamic_rotate %14 by %c1_i32_8 dim 2 : vector<1x16x16xf32>, i32 -> vector<1x16x16xf32>
    %c0_i32_9 = arith.constant 0 : i32
    %16 = vector.broadcast %c0_i32_9 : i32 to vector<1x16x16xi32>
    %17 = arith.cmpi eq, %6, %16 : vector<1x16x16xi32>
    %cst_10 = arith.constant 0.000000e+00 : f32
    %18 = vector.broadcast %cst_10 : f32 to vector<1x16x16xf32>
    %19 = arith.select %17, %18, %15 : vector<1x16x16xi1>, vector<1x16x16xf32>
    %20 = vector.broadcast %8 : f32 to vector<1x16x16xf32>
    %21 = arith.mulf %20, %19 : vector<1x16x16xf32>
    %22 = arith.addf %7, %21 : vector<1x16x16xf32>
    %c1_i32_11 = arith.constant 1 : i32
    %23 = tpu.dynamic_rotate %4 by %c1_i32_11 dim 1 : vector<1x16x16xf32>, i32 -> vector<1x16x16xf32>
    %c0_i32_12 = arith.constant 0 : i32
    %24 = vector.broadcast %c0_i32_12 : i32 to vector<1x16x16xi32>
    %25 = arith.cmpi eq, %5, %24 : vector<1x16x16xi32>
    %cst_13 = arith.constant 0.000000e+00 : f32
    %26 = vector.broadcast %cst_13 : f32 to vector<1x16x16xf32>
    %27 = arith.select %25, %26, %23 : vector<1x16x16xi1>, vector<1x16x16xf32>
    %c1_i32_14 = arith.constant 1 : i32
    %28 = tpu.dynamic_rotate %27 by %c1_i32_14 dim 2 : vector<1x16x16xf32>, i32 -> vector<1x16x16xf32>
    %c0_i32_15 = arith.constant 0 : i32
    %29 = vector.broadcast %c0_i32_15 : i32 to vector<1x16x16xi32>
    %30 = arith.cmpi eq, %6, %29 : vector<1x16x16xi32>
    %cst_16 = arith.constant 0.000000e+00 : f32
    %31 = vector.broadcast %cst_16 : f32 to vector<1x16x16xf32>
    %32 = arith.select %30, %31, %28 : vector<1x16x16xi1>, vector<1x16x16xf32>
    %33 = vector.broadcast %9 : f32 to vector<1x16x16xf32>
    %34 = arith.mulf %33, %32 : vector<1x16x16xf32>
    %35 = arith.addf %22, %34 : vector<1x16x16xf32>
    %c1 = arith.constant 1 : index
    %36 = memref.load %arg1[%c1] : memref<18xf32, #tpu.memory_space<smem>>
    %c10 = arith.constant 10 : index
    %37 = memref.load %arg1[%c10] : memref<18xf32, #tpu.memory_space<smem>>
    %c1_i32_17 = arith.constant 1 : i32
    %38 = tpu.dynamic_rotate %3 by %c1_i32_17 dim 1 : vector<1x16x16xf32>, i32 -> vector<1x16x16xf32>
    %c0_i32_18 = arith.constant 0 : i32
    %39 = vector.broadcast %c0_i32_18 : i32 to vector<1x16x16xi32>
    %40 = arith.cmpi eq, %5, %39 : vector<1x16x16xi32>
    %cst_19 = arith.constant 0.000000e+00 : f32
    %41 = vector.broadcast %cst_19 : f32 to vector<1x16x16xf32>
    %42 = arith.select %40, %41, %38 : vector<1x16x16xi1>, vector<1x16x16xf32>
    %43 = vector.broadcast %36 : f32 to vector<1x16x16xf32>
    %44 = arith.mulf %43, %42 : vector<1x16x16xf32>
    %45 = arith.addf %35, %44 : vector<1x16x16xf32>
    %c1_i32_20 = arith.constant 1 : i32
    %46 = tpu.dynamic_rotate %4 by %c1_i32_20 dim 1 : vector<1x16x16xf32>, i32 -> vector<1x16x16xf32>
    %c0_i32_21 = arith.constant 0 : i32
    %47 = vector.broadcast %c0_i32_21 : i32 to vector<1x16x16xi32>
    %48 = arith.cmpi eq, %5, %47 : vector<1x16x16xi32>
    %cst_22 = arith.constant 0.000000e+00 : f32
    %49 = vector.broadcast %cst_22 : f32 to vector<1x16x16xf32>
    %50 = arith.select %48, %49, %46 : vector<1x16x16xi1>, vector<1x16x16xf32>
    %51 = vector.broadcast %37 : f32 to vector<1x16x16xf32>
    %52 = arith.mulf %51, %50 : vector<1x16x16xf32>
    %53 = arith.addf %45, %52 : vector<1x16x16xf32>
    %c2 = arith.constant 2 : index
    %54 = memref.load %arg1[%c2] : memref<18xf32, #tpu.memory_space<smem>>
    %c11 = arith.constant 11 : index
    %55 = memref.load %arg1[%c11] : memref<18xf32, #tpu.memory_space<smem>>
    %c1_i32_23 = arith.constant 1 : i32
    %56 = tpu.dynamic_rotate %3 by %c1_i32_23 dim 1 : vector<1x16x16xf32>, i32 -> vector<1x16x16xf32>
    %c0_i32_24 = arith.constant 0 : i32
    %57 = vector.broadcast %c0_i32_24 : i32 to vector<1x16x16xi32>
    %58 = arith.cmpi eq, %5, %57 : vector<1x16x16xi32>
    %cst_25 = arith.constant 0.000000e+00 : f32
    %59 = vector.broadcast %cst_25 : f32 to vector<1x16x16xf32>
    %60 = arith.select %58, %59, %56 : vector<1x16x16xi1>, vector<1x16x16xf32>
    %c15_i32 = arith.constant 15 : i32
    %61 = tpu.dynamic_rotate %60 by %c15_i32 dim 2 : vector<1x16x16xf32>, i32 -> vector<1x16x16xf32>
    %c15_i32_26 = arith.constant 15 : i32
    %62 = vector.broadcast %c15_i32_26 : i32 to vector<1x16x16xi32>
    %63 = arith.cmpi eq, %6, %62 : vector<1x16x16xi32>
    %cst_27 = arith.constant 0.000000e+00 : f32
    %64 = vector.broadcast %cst_27 : f32 to vector<1x16x16xf32>
    %65 = arith.select %63, %64, %61 : vector<1x16x16xi1>, vector<1x16x16xf32>
    %66 = vector.broadcast %54 : f32 to vector<1x16x16xf32>
    %67 = arith.mulf %66, %65 : vector<1x16x16xf32>
    %68 = arith.addf %53, %67 : vector<1x16x16xf32>
    %c1_i32_28 = arith.constant 1 : i32
    %69 = tpu.dynamic_rotate %4 by %c1_i32_28 dim 1 : vector<1x16x16xf32>, i32 -> vector<1x16x16xf32>
    %c0_i32_29 = arith.constant 0 : i32
    %70 = vector.broadcast %c0_i32_29 : i32 to vector<1x16x16xi32>
    %71 = arith.cmpi eq, %5, %70 : vector<1x16x16xi32>
    %cst_30 = arith.constant 0.000000e+00 : f32
    %72 = vector.broadcast %cst_30 : f32 to vector<1x16x16xf32>
    %73 = arith.select %71, %72, %69 : vector<1x16x16xi1>, vector<1x16x16xf32>
    %c15_i32_31 = arith.constant 15 : i32
    %74 = tpu.dynamic_rotate %73 by %c15_i32_31 dim 2 : vector<1x16x16xf32>, i32 -> vector<1x16x16xf32>
    %c15_i32_32 = arith.constant 15 : i32
    %75 = vector.broadcast %c15_i32_32 : i32 to vector<1x16x16xi32>
    %76 = arith.cmpi eq, %6, %75 : vector<1x16x16xi32>
    %cst_33 = arith.constant 0.000000e+00 : f32
    %77 = vector.broadcast %cst_33 : f32 to vector<1x16x16xf32>
    %78 = arith.select %76, %77, %74 : vector<1x16x16xi1>, vector<1x16x16xf32>
    %79 = vector.broadcast %55 : f32 to vector<1x16x16xf32>
    %80 = arith.mulf %79, %78 : vector<1x16x16xf32>
    %81 = arith.addf %68, %80 : vector<1x16x16xf32>
    %c3 = arith.constant 3 : index
    %82 = memref.load %arg1[%c3] : memref<18xf32, #tpu.memory_space<smem>>
    %c12 = arith.constant 12 : index
    %83 = memref.load %arg1[%c12] : memref<18xf32, #tpu.memory_space<smem>>
    %c1_i32_34 = arith.constant 1 : i32
    %84 = tpu.dynamic_rotate %3 by %c1_i32_34 dim 2 : vector<1x16x16xf32>, i32 -> vector<1x16x16xf32>
    %c0_i32_35 = arith.constant 0 : i32
    %85 = vector.broadcast %c0_i32_35 : i32 to vector<1x16x16xi32>
    %86 = arith.cmpi eq, %6, %85 : vector<1x16x16xi32>
    %cst_36 = arith.constant 0.000000e+00 : f32
    %87 = vector.broadcast %cst_36 : f32 to vector<1x16x16xf32>
    %88 = arith.select %86, %87, %84 : vector<1x16x16xi1>, vector<1x16x16xf32>
    %89 = vector.broadcast %82 : f32 to vector<1x16x16xf32>
    %90 = arith.mulf %89, %88 : vector<1x16x16xf32>
    %91 = arith.addf %81, %90 : vector<1x16x16xf32>
    %c1_i32_37 = arith.constant 1 : i32
    %92 = tpu.dynamic_rotate %4 by %c1_i32_37 dim 2 : vector<1x16x16xf32>, i32 -> vector<1x16x16xf32>
    %c0_i32_38 = arith.constant 0 : i32
    %93 = vector.broadcast %c0_i32_38 : i32 to vector<1x16x16xi32>
    %94 = arith.cmpi eq, %6, %93 : vector<1x16x16xi32>
    %cst_39 = arith.constant 0.000000e+00 : f32
    %95 = vector.broadcast %cst_39 : f32 to vector<1x16x16xf32>
    %96 = arith.select %94, %95, %92 : vector<1x16x16xi1>, vector<1x16x16xf32>
    %97 = vector.broadcast %83 : f32 to vector<1x16x16xf32>
    %98 = arith.mulf %97, %96 : vector<1x16x16xf32>
    %99 = arith.addf %91, %98 : vector<1x16x16xf32>
    %c4 = arith.constant 4 : index
    %100 = memref.load %arg1[%c4] : memref<18xf32, #tpu.memory_space<smem>>
    %c13 = arith.constant 13 : index
    %101 = memref.load %arg1[%c13] : memref<18xf32, #tpu.memory_space<smem>>
    %102 = vector.broadcast %100 : f32 to vector<1x16x16xf32>
    %103 = arith.mulf %102, %3 : vector<1x16x16xf32>
    %104 = arith.addf %99, %103 : vector<1x16x16xf32>
    %105 = vector.broadcast %101 : f32 to vector<1x16x16xf32>
    %106 = arith.mulf %105, %4 : vector<1x16x16xf32>
    %107 = arith.addf %104, %106 : vector<1x16x16xf32>
    %c5 = arith.constant 5 : index
    %108 = memref.load %arg1[%c5] : memref<18xf32, #tpu.memory_space<smem>>
    %c14 = arith.constant 14 : index
    %109 = memref.load %arg1[%c14] : memref<18xf32, #tpu.memory_space<smem>>
    %c15_i32_40 = arith.constant 15 : i32
    %110 = tpu.dynamic_rotate %3 by %c15_i32_40 dim 2 : vector<1x16x16xf32>, i32 -> vector<1x16x16xf32>
    %c15_i32_41 = arith.constant 15 : i32
    %111 = vector.broadcast %c15_i32_41 : i32 to vector<1x16x16xi32>
    %112 = arith.cmpi eq, %6, %111 : vector<1x16x16xi32>
    %cst_42 = arith.constant 0.000000e+00 : f32
    %113 = vector.broadcast %cst_42 : f32 to vector<1x16x16xf32>
    %114 = arith.select %112, %113, %110 : vector<1x16x16xi1>, vector<1x16x16xf32>
    %115 = vector.broadcast %108 : f32 to vector<1x16x16xf32>
    %116 = arith.mulf %115, %114 : vector<1x16x16xf32>
    %117 = arith.addf %107, %116 : vector<1x16x16xf32>
    %c15_i32_43 = arith.constant 15 : i32
    %118 = tpu.dynamic_rotate %4 by %c15_i32_43 dim 2 : vector<1x16x16xf32>, i32 -> vector<1x16x16xf32>
    %c15_i32_44 = arith.constant 15 : i32
    %119 = vector.broadcast %c15_i32_44 : i32 to vector<1x16x16xi32>
    %120 = arith.cmpi eq, %6, %119 : vector<1x16x16xi32>
    %cst_45 = arith.constant 0.000000e+00 : f32
    %121 = vector.broadcast %cst_45 : f32 to vector<1x16x16xf32>
    %122 = arith.select %120, %121, %118 : vector<1x16x16xi1>, vector<1x16x16xf32>
    %123 = vector.broadcast %109 : f32 to vector<1x16x16xf32>
    %124 = arith.mulf %123, %122 : vector<1x16x16xf32>
    %125 = arith.addf %117, %124 : vector<1x16x16xf32>
    %c6 = arith.constant 6 : index
    %126 = memref.load %arg1[%c6] : memref<18xf32, #tpu.memory_space<smem>>
    %c15 = arith.constant 15 : index
    %127 = memref.load %arg1[%c15] : memref<18xf32, #tpu.memory_space<smem>>
    %c15_i32_46 = arith.constant 15 : i32
    %128 = tpu.dynamic_rotate %3 by %c15_i32_46 dim 1 : vector<1x16x16xf32>, i32 -> vector<1x16x16xf32>
    %c15_i32_47 = arith.constant 15 : i32
    %129 = vector.broadcast %c15_i32_47 : i32 to vector<1x16x16xi32>
    %130 = arith.cmpi eq, %5, %129 : vector<1x16x16xi32>
    %cst_48 = arith.constant 0.000000e+00 : f32
    %131 = vector.broadcast %cst_48 : f32 to vector<1x16x16xf32>
    %132 = arith.select %130, %131, %128 : vector<1x16x16xi1>, vector<1x16x16xf32>
    %c1_i32_49 = arith.constant 1 : i32
    %133 = tpu.dynamic_rotate %132 by %c1_i32_49 dim 2 : vector<1x16x16xf32>, i32 -> vector<1x16x16xf32>
    %c0_i32_50 = arith.constant 0 : i32
    %134 = vector.broadcast %c0_i32_50 : i32 to vector<1x16x16xi32>
    %135 = arith.cmpi eq, %6, %134 : vector<1x16x16xi32>
    %cst_51 = arith.constant 0.000000e+00 : f32
    %136 = vector.broadcast %cst_51 : f32 to vector<1x16x16xf32>
    %137 = arith.select %135, %136, %133 : vector<1x16x16xi1>, vector<1x16x16xf32>
    %138 = vector.broadcast %126 : f32 to vector<1x16x16xf32>
    %139 = arith.mulf %138, %137 : vector<1x16x16xf32>
    %140 = arith.addf %125, %139 : vector<1x16x16xf32>
    %c15_i32_52 = arith.constant 15 : i32
    %141 = tpu.dynamic_rotate %4 by %c15_i32_52 dim 1 : vector<1x16x16xf32>, i32 -> vector<1x16x16xf32>
    %c15_i32_53 = arith.constant 15 : i32
    %142 = vector.broadcast %c15_i32_53 : i32 to vector<1x16x16xi32>
    %143 = arith.cmpi eq, %5, %142 : vector<1x16x16xi32>
    %cst_54 = arith.constant 0.000000e+00 : f32
    %144 = vector.broadcast %cst_54 : f32 to vector<1x16x16xf32>
    %145 = arith.select %143, %144, %141 : vector<1x16x16xi1>, vector<1x16x16xf32>
    %c1_i32_55 = arith.constant 1 : i32
    %146 = tpu.dynamic_rotate %145 by %c1_i32_55 dim 2 : vector<1x16x16xf32>, i32 -> vector<1x16x16xf32>
    %c0_i32_56 = arith.constant 0 : i32
    %147 = vector.broadcast %c0_i32_56 : i32 to vector<1x16x16xi32>
    %148 = arith.cmpi eq, %6, %147 : vector<1x16x16xi32>
    %cst_57 = arith.constant 0.000000e+00 : f32
    %149 = vector.broadcast %cst_57 : f32 to vector<1x16x16xf32>
    %150 = arith.select %148, %149, %146 : vector<1x16x16xi1>, vector<1x16x16xf32>
    %151 = vector.broadcast %127 : f32 to vector<1x16x16xf32>
    %152 = arith.mulf %151, %150 : vector<1x16x16xf32>
    %153 = arith.addf %140, %152 : vector<1x16x16xf32>
    %c7 = arith.constant 7 : index
    %154 = memref.load %arg1[%c7] : memref<18xf32, #tpu.memory_space<smem>>
    %c16 = arith.constant 16 : index
    %155 = memref.load %arg1[%c16] : memref<18xf32, #tpu.memory_space<smem>>
    %c15_i32_58 = arith.constant 15 : i32
    %156 = tpu.dynamic_rotate %3 by %c15_i32_58 dim 1 : vector<1x16x16xf32>, i32 -> vector<1x16x16xf32>
    %c15_i32_59 = arith.constant 15 : i32
    %157 = vector.broadcast %c15_i32_59 : i32 to vector<1x16x16xi32>
    %158 = arith.cmpi eq, %5, %157 : vector<1x16x16xi32>
    %cst_60 = arith.constant 0.000000e+00 : f32
    %159 = vector.broadcast %cst_60 : f32 to vector<1x16x16xf32>
    %160 = arith.select %158, %159, %156 : vector<1x16x16xi1>, vector<1x16x16xf32>
    %161 = vector.broadcast %154 : f32 to vector<1x16x16xf32>
    %162 = arith.mulf %161, %160 : vector<1x16x16xf32>
    %163 = arith.addf %153, %162 : vector<1x16x16xf32>
    %c15_i32_61 = arith.constant 15 : i32
    %164 = tpu.dynamic_rotate %4 by %c15_i32_61 dim 1 : vector<1x16x16xf32>, i32 -> vector<1x16x16xf32>
    %c15_i32_62 = arith.constant 15 : i32
    %165 = vector.broadcast %c15_i32_62 : i32 to vector<1x16x16xi32>
    %166 = arith.cmpi eq, %5, %165 : vector<1x16x16xi32>
    %cst_63 = arith.constant 0.000000e+00 : f32
    %167 = vector.broadcast %cst_63 : f32 to vector<1x16x16xf32>
    %168 = arith.select %166, %167, %164 : vector<1x16x16xi1>, vector<1x16x16xf32>
    %169 = vector.broadcast %155 : f32 to vector<1x16x16xf32>
    %170 = arith.mulf %169, %168 : vector<1x16x16xf32>
    %171 = arith.addf %163, %170 : vector<1x16x16xf32>
    %c8 = arith.constant 8 : index
    %172 = memref.load %arg1[%c8] : memref<18xf32, #tpu.memory_space<smem>>
    %c17 = arith.constant 17 : index
    %173 = memref.load %arg1[%c17] : memref<18xf32, #tpu.memory_space<smem>>
    %c15_i32_64 = arith.constant 15 : i32
    %174 = tpu.dynamic_rotate %3 by %c15_i32_64 dim 1 : vector<1x16x16xf32>, i32 -> vector<1x16x16xf32>
    %c15_i32_65 = arith.constant 15 : i32
    %175 = vector.broadcast %c15_i32_65 : i32 to vector<1x16x16xi32>
    %176 = arith.cmpi eq, %5, %175 : vector<1x16x16xi32>
    %cst_66 = arith.constant 0.000000e+00 : f32
    %177 = vector.broadcast %cst_66 : f32 to vector<1x16x16xf32>
    %178 = arith.select %176, %177, %174 : vector<1x16x16xi1>, vector<1x16x16xf32>
    %c15_i32_67 = arith.constant 15 : i32
    %179 = tpu.dynamic_rotate %178 by %c15_i32_67 dim 2 : vector<1x16x16xf32>, i32 -> vector<1x16x16xf32>
    %c15_i32_68 = arith.constant 15 : i32
    %180 = vector.broadcast %c15_i32_68 : i32 to vector<1x16x16xi32>
    %181 = arith.cmpi eq, %6, %180 : vector<1x16x16xi32>
    %cst_69 = arith.constant 0.000000e+00 : f32
    %182 = vector.broadcast %cst_69 : f32 to vector<1x16x16xf32>
    %183 = arith.select %181, %182, %179 : vector<1x16x16xi1>, vector<1x16x16xf32>
    %184 = vector.broadcast %172 : f32 to vector<1x16x16xf32>
    %185 = arith.mulf %184, %183 : vector<1x16x16xf32>
    %186 = arith.addf %171, %185 : vector<1x16x16xf32>
    %c15_i32_70 = arith.constant 15 : i32
    %187 = tpu.dynamic_rotate %4 by %c15_i32_70 dim 1 : vector<1x16x16xf32>, i32 -> vector<1x16x16xf32>
    %c15_i32_71 = arith.constant 15 : i32
    %188 = vector.broadcast %c15_i32_71 : i32 to vector<1x16x16xi32>
    %189 = arith.cmpi eq, %5, %188 : vector<1x16x16xi32>
    %cst_72 = arith.constant 0.000000e+00 : f32
    %190 = vector.broadcast %cst_72 : f32 to vector<1x16x16xf32>
    %191 = arith.select %189, %190, %187 : vector<1x16x16xi1>, vector<1x16x16xf32>
    %c15_i32_73 = arith.constant 15 : i32
    %192 = tpu.dynamic_rotate %191 by %c15_i32_73 dim 2 : vector<1x16x16xf32>, i32 -> vector<1x16x16xf32>
    %c15_i32_74 = arith.constant 15 : i32
    %193 = vector.broadcast %c15_i32_74 : i32 to vector<1x16x16xi32>
    %194 = arith.cmpi eq, %6, %193 : vector<1x16x16xi32>
    %cst_75 = arith.constant 0.000000e+00 : f32
    %195 = vector.broadcast %cst_75 : f32 to vector<1x16x16xf32>
    %196 = arith.select %194, %195, %192 : vector<1x16x16xi1>, vector<1x16x16xf32>
    %197 = vector.broadcast %173 : f32 to vector<1x16x16xf32>
    %198 = arith.mulf %197, %196 : vector<1x16x16xf32>
    %199 = arith.addf %186, %198 : vector<1x16x16xf32>
    %c0_76 = arith.constant 0 : index
    %c0_77 = arith.constant 0 : index
    %c0_78 = arith.constant 0 : index
    %200 = vector.load %arg3[%c0_76, %c0_77, %c0_78] : memref<1x16x16xf32, #tpu.memory_space<vmem>>, vector<1x16x16xf32>
    tpu.vector_store %arg3[%c0_76, %c0_77, %c0_78], %199 {strides = array<i32>} : memref<1x16x16xf32, #tpu.memory_space<vmem>>, vector<1x16x16xf32>,
    return
  }
  func.func @transform_0(%arg0: i32) -> i32 {
    %c0_i32 = arith.constant 0 : i32
    %c0_i32_0 = arith.constant 0 : i32
    return %c0_i32 : i32
  }
  func.func @transform_1(%arg0: i32) -> (i32, i32, i32, i32) {
    %c0_i32 = arith.constant 0 : i32
    %c0_i32_0 = arith.constant 0 : i32
    %c0_i32_1 = arith.constant 0 : i32
    %c0_i32_2 = arith.constant 0 : i32
    return %arg0, %c0_i32, %c0_i32_0, %c0_i32_1 : i32, i32, i32, i32
  }
  func.func @transform_2(%arg0: i32) -> (i32, i32, i32) {
    %c0_i32 = arith.constant 0 : i32
    %c0_i32_0 = arith.constant 0 : i32
    %c0_i32_1 = arith.constant 0 : i32
    return %arg0, %c0_i32, %c0_i32_0 : i32, i32, i32
  }
}

</mosaic_0001>

<llo_original>
// kernel: tpu_custom_call.1
$region0: #{tpu_custom_call.1}
  #allocation0 [shape = 'u32[]', space=smem, size = 0x4, offset = 0x4, fixed_abs, tag = 'smem constant byte address 0x4 - core index']
  #allocation1 [shape = 'u32[72,128]{1,0:T(1,128)}', space=vmem, size = 0x9000, scoped, tag = 'internal scratch']
  %s0 = inlined_call_operand.hbm [shape: f32[18], index: 0, kind: input, shape index: {}]
  %s1 = inlined_call_operand.hbm [shape: f32[2,4,16,16], index: 1, kind: input, shape index: {}]
  %s2 = inlined_call_operand.hbm [shape: f32[2,16,16], index: 2, kind: output, shape index: {}]
  %s3 = sld [smem:[#allocation0]]
  $region49: #{tpu_custom_call.1} parent=0
    _
  %s5 = ssub.s32 1, %s3
  %s6 = scalar_select 0, %s5, %s3
  $region1: #{tpu_custom_call.1} parent=0
    #allocation2 [shape = 'u8[512]{0}', space=smem, size = 0x200, scoped, tag = 'input window, operand 0, single buffered']
    #allocation3 [shape = 's32[2]{0}', space=sflag, size = 0x8, scoped, tag = 'scoped memory for tpu_custom_call.1']
    #allocation4 [shape = 's32[2]{0}', space=sflag, size = 0x8, scoped, tag = 'scoped memory for tpu_custom_call.1']
    #allocation5 [shape = 's32[2]{0}', space=sflag, size = 0x8, scoped, tag = 'scoped memory for tpu_custom_call.1']
    #allocation6 [shape = 'u8[65536]{0}', space=vmem, size = 0x10000, scoped, tag = 'input window, operand 1']
    #allocation7 [shape = 'u8[16384]{0}', space=vmem, size = 0x4000, scoped, tag = 'output window, operand 0']
    %7 = vsyncpa [#allocation5], 0
    %8 = vsyncpa [#allocation3], 0
    %s9 = scalar_lea.sflag [#allocation3], 1
    %10 = vsyncpa %s9, 0
    %11 = vsyncpa [#allocation4], 0
    %s12 = scalar_lea.sflag [#allocation4], 1
    %13 = vsyncpa %s12, 0
    loop: start=0, step=1, limit=4
    $region2: #{tpu_custom_call.1} parent=1 // loop_pre_header
      _
    $region3: #{tpu_custom_call.1} parent=1 // loop_header
      %s15 = sphi 0, %s19
      %p16 = scmp.ge.s32.totalorder %s15, 4
      %s23 = sphi 0, %s23
      %s25 = sphi 0, %s23
      %s26 = sphi 0, %s25
      %s40 = sphi 0, %s26
      %s46 = sphi 0, %s48
      %s49 = sphi 0, %s46
      %s50 = sphi 0, %s49
      %s66 = sphi 0, %s50
      %s72 = sphi 0, %s74
      %s75 = sphi 0, %s72
      %s76 = sphi 0, %s75
      %s92 = sphi 0, %s76
    $region4: #{tpu_custom_call.1} parent=1 // loop_header_branch
      %18 = sbr.rel (%p16) target = $region8
    $region5: #{tpu_custom_call.1} parent=1 // loop_body
      %s20 = ssub.s32 %s15, 1
      %s21 = ssub.s32 %s15, 2
      %s22 = sadd.s32 %s15, 1
      %s24 = sadd.s32 %s23, 1
      %p27 = scmp.eq.s32.totalorder %s15, 1
      %p28 = scmp.ne.s32.totalorder %s23, %s25
      %p29 = scmp.eq.s32.totalorder %s15, 0
      %p30 = por %p28, %p29
      %p31 = scmp.ne.s32.totalorder %s23, %s25
      %p32 = scmp.eq.s32.totalorder %s20, 1
      %p33 = por %p31, %p32
      %p34 = scmp.ne.s32.totalorder %s25, %s26
      %p35 = scmp.eq.s32.totalorder %s20, 0
      %p36 = por %p34, %p35
      %p37 = scmp.ne.s32.totalorder %s25, %s26
      %p38 = scmp.eq.s32.totalorder %s21, 1
      %p39 = por %p37, %p38
      %p41 = scmp.ne.s32.totalorder %s26, %s40
      %p42 = scmp.eq.s32.totalorder %s21, 0
      %p43 = por %p41, %p42
      %s44 = ssub.s32 %s15, %s22
      %p45 = scmp.eq.s32.totalorder %s44, 0
      %s47 = sadd.s32 %s46, 1
      %s48 = scalar_select %p45, %s46, %s47
      %p51 = pneg %p45
      %p52 = scmp.eq.s32.totalorder %s15, 1
      %p53 = por %p51, %p52
      %p54 = scmp.ne.s32.totalorder %s46, %s49
      %p55 = scmp.eq.s32.totalorder %s15, 0
      %p56 = por %p54, %p55
      %p57 = scmp.ne.s32.totalorder %s46, %s49
      %p58 = scmp.eq.s32.totalorder %s20, 1
      %p59 = por %p57, %p58
      %p60 = scmp.ne.s32.totalorder %s49, %s50
      %p61 = scmp.eq.s32.totalorder %s20, 0
      %p62 = por %p60, %p61
      %p63 = scmp.ne.s32.totalorder %s49, %s50
      %p64 = scmp.eq.s32.totalorder %s21, 1
      %p65 = por %p63, %p64
      %p67 = scmp.ne.s32.totalorder %s50, %s66
      %p68 = scmp.eq.s32.totalorder %s21, 0
      %p69 = por %p67, %p68
      %s70 = ssub.s32 %s15, %s22
      %p71 = scmp.eq.s32.totalorder %s70, 0
      %s73 = sadd.s32 %s72, 1
      %s74 = scalar_select %p71, %s72, %s73
      %p77 = pneg %p71
      %p78 = scmp.eq.s32.totalorder %s15, 1
      %p79 = por %p77, %p78
      %p80 = scmp.ne.s32.totalorder %s72, %s75
      %p81 = scmp.eq.s32.totalorder %s15, 0
      %p82 = por %p80, %p81
      %p83 = scmp.ne.s32.totalorder %s72, %s75
      %p84 = scmp.eq.s32.totalorder %s20, 1
      %p85 = por %p83, %p84
      %p86 = scmp.ne.s32.totalorder %s75, %s76
      %p87 = scmp.eq.s32.totalorder %s20, 0
      %p88 = por %p86, %p87
      %p89 = scmp.ne.s32.totalorder %s75, %s76
      %p90 = scmp.eq.s32.totalorder %s21, 1
      %p91 = por %p89, %p90
      %p93 = scmp.ne.s32.totalorder %s76, %s92
      %p94 = scmp.eq.s32.totalorder %s21, 0
      %p95 = por %p93, %p94
      %p96 = scmp.le.s32.totalorder 1, %s15
      %p97 = scmp.lt.s32.totalorder %s15, 3
      %p98 = pnand %p96, %p97
      %p99 = pneg %p98
      // Predicated region
      $region9: #{tpu_custom_call.1} parent=5 // pred_check
        _
      $region10: #{tpu_custom_call.1} parent=5 // pred_check_branch
        %101 = sbr.rel (%p98) target = $region12
      $region11: #{tpu_custom_call.1} parent=5 // pred_region
        %s102 = ssub.s32 %s15, 1
        // Predicated region
        $region13: #{tpu_custom_call.1} parent=11 // pred_check
          %p103 = pneg %p36
        $region14: #{tpu_custom_call.1} parent=11 // pred_check_branch
          %105 = sbr.rel (%p103) target = $region16
        $region15: #{tpu_custom_call.1} parent=11 // pred_region
          %107 = vsyncadd [#allocation5], 0
          %s109 = sshll.u32 %s0, 4
          %s110 = int_to_ptr.hbm [resolvable:$true] %s109
          %112 = dma.hbm_to_smem %s110, 16, [#allocation2], [#allocation5]
        $region16: #{tpu_custom_call.1} parent=11 // pred_fallthru
          _
      $region12: #{tpu_custom_call.1} parent=5 // pred_fallthru
        _
      %p113 = scmp.lt.s32.totalorder %s15, 2
      // Predicated region
      $region17: #{tpu_custom_call.1} parent=5 // pred_check
        %p114 = pneg %p113
      $region18: #{tpu_custom_call.1} parent=5 // pred_check_branch
        %116 = sbr.rel (%p114) target = $region20
      $region19: #{tpu_custom_call.1} parent=5 // pred_region
        // Predicated region
        $region21: #{tpu_custom_call.1} parent=19 // pred_check
          %p117 = pneg %p56
        $region22: #{tpu_custom_call.1} parent=19 // pred_check_branch
          %119 = sbr.rel (%p117) target = $region24
        $region23: #{tpu_custom_call.1} parent=19 // pred_region
          %s120 = sand.u32 %s46, 1
          %s121 = scalar_lea.sflag [#allocation3], %s120
          %s122 = sand.u32 %s46, 1
          %s123 = smul.addr %s122, 64
          %s124 = scalar_lea.vmem [#allocation6], %s123
          %126 = vsyncadd %s121, 0
          %s127 = smul.addr %s15, 8
          %s128 = smul.addr %s127, 8
          %s129 = scalar_lea.hbm %s1, %s128
          %s130 = sshll.u32 %s129, 4
          %s131 = int_to_ptr.hbm [resolvable:$true] %s130
          %s132 = sshll.u32 %s124, 4
          %s133 = int_to_ptr.vmem [resolvable:$true] %s132
          %138 = dma.hbm_to_vmem [thread:$0]  %s131, 1024, %s133, %s121, 128, 128, 8
        $region24: #{tpu_custom_call.1} parent=19 // pred_fallthru
          _
      $region20: #{tpu_custom_call.1} parent=5 // pred_fallthru
        _
      %p139 = scmp.le.s32.totalorder 1, %s15
      %p140 = scmp.lt.s32.totalorder %s15, 3
      %p141 = pnand %p139, %p140
      %p142 = pneg %p141
      // Predicated region
      $region25: #{tpu_custom_call.1} parent=5 // pred_check
        _
      $region26: #{tpu_custom_call.1} parent=5 // pred_check_branch
        %144 = sbr.rel (%p141) target = $region28
      $region27: #{tpu_custom_call.1} parent=5 // pred_region
        %s145 = ssub.s32 %s15, 1
        // Predicated region
        $region29: #{tpu_custom_call.1} parent=27 // pred_check
          %p146 = pneg %p36
        $region30: #{tpu_custom_call.1} parent=27 // pred_check_branch
          %148 = sbr.rel (%p146) target = $region32
        $region31: #{tpu_custom_call.1} parent=27 // pred_region
          %150 = dma.done [#allocation5], 16
        $region32: #{tpu_custom_call.1} parent=27 // pred_fallthru
          _
        %s151 = sand.u32 %s49, 1
        %s152 = scalar_lea.sflag [#allocation3], %s151
        %s153 = sand.u32 %s49, 1
        %s154 = smul.addr %s153, 64
        %s155 = scalar_lea.vmem [#allocation6], %s154
        // Predicated region
        $region33: #{tpu_custom_call.1} parent=27 // pred_check
          %p156 = pneg %p62
        $region34: #{tpu_custom_call.1} parent=27 // pred_check_branch
          %158 = sbr.rel (%p156) target = $region36
        $region35: #{tpu_custom_call.1} parent=27 // pred_region
          %160 = dma.done %s152, 1024
        $region36: #{tpu_custom_call.1} parent=27 // pred_fallthru
          _
        %161 = sfence
        %p162 = pneg %p36
        %p163 = pneg %p33
        %s164 = sand.u32 %s49, 1
        %s165 = scalar_lea.sflag [#allocation3], %s164
        %s166 = sand.u32 %s49, 1
        %s167 = smul.addr %s166, 64
        %s168 = scalar_lea.vmem [#allocation6], %s167
        %p169 = pneg %p62
        %p170 = pneg %p59
        %p171 = pneg %p88
        %p172 = pneg %p85
        %s173 = sand.u32 %s75, 1
        %s174 = scalar_lea.sflag [#allocation4], %s173
        %s175 = sand.u32 %s75, 1
        %s176 = smul.addr %s175, 16
        %s177 = scalar_lea.vmem [#allocation7], %s176
        %v178 = vld [vmem:[%s155] sm:$0xff]
        %v179 = vld [vmem:[%s155 + $0x8] sm:$0xff]
        %v180 = vld [vmem:[%s155 + $0x10] sm:$0xff]
        %v181 = vld [vmem:[%s155 + $0x18] sm:$0xff]
        %v182 = vld [vmem:[%s155 + $0x20] sm:$0xff]
        %v183 = vld [vmem:[%s155 + $0x28] sm:$0xff]
        %v184 = vld [vmem:[%s155 + $0x30] sm:$0xff]
        %v185 = vld [vmem:[%s155 + $0x38] sm:$0xff]
        %vm186 = vcmask 130048
        %v187 = vsel %vm186, %v178, 0.0
        %v188 = vsel %vm186, %v180, 0.0
        %v189 = vadd.f32 %v187, %v188
        %v190 = vsel %vm186, %v182, 0.0
        %v191 = vadd.f32 %v189, %v190
        %v192 = vsel %vm186, %v184, 0.0
        %v193 = vadd.f32 %v191, %v192
        %v194 = vsel %vm186, %v179, 0.0
        %v195 = vsel %vm186, %v181, 0.0
        %v196 = vadd.f32 %v194, %v195
        %v197 = vsel %vm186, %v183, 0.0
        %v198 = vadd.f32 %v196, %v197
        %v199 = vsel %vm186, %v185, 0.0
        %v200 = vadd.f32 %v198, %v199
        %v201 = vrcp.pop 4.0
        %v202 = vmul.f32 4.0, %v201
        %v203 = vsub.f32 1.0, %v202
        %v204 = vmul.f32 %v201, %v203
        %v205 = vadd.f32 %v201, %v204
        %vm206 = vweird.f32 %v201
        %v207 = vsel %vm206, %v201, %v205
        %v208 = vmul.f32 %v193, %v207
        %v209 = vmul.f32 %v200, %v207
        %v210 = vsel %vm186, %v178, -inf
        %v211 = vsel %vm186, %v180, -inf
        %v212 = vsel %vm186, %v182, -inf
        %v213 = vmax.f32 %v210, %v212
        %v214 = vsel %vm186, %v184, -inf
        %v215 = vmax.f32 %v211, %v214
        %v216 = vmax.f32 %v213, %v215
        %v217 = vsel %vm186, %v179, -inf
        %v218 = vsel %vm186, %v181, -inf
        %v219 = vsel %vm186, %v183, -inf
        %v220 = vmax.f32 %v217, %v219
        %v221 = vsel %vm186, %v185, -inf
        %v222 = vmax.f32 %v218, %v221
        %v223 = vmax.f32 %v220, %v222
        %v224 = vlaneseq
        %v225 = vshrl.u32 %v224, 7
        %v226 = vadd.s32 %v225, 8
        %v227 = vlaneseq
        %v228 = vand.u32 %v227, 127
        %s229 = sld [smem:[#allocation2]]
        %s230 = sld [smem:[#allocation2 + $0x9]]
        %v231 = vrot.slane %v208, 7
        %v232 = vrot.slane %v209, 7
        %vm233 = vcmp.lt.s32.totalorder %v225, 1
        %v234 = vsel %vm233, %v231, %v232
        %v235 = vsel %vm233, %v232, %v231
        %vm236 = vcmp.eq.s32.totalorder %v225, 0
        %vm237 = vcmp.eq.s32.totalorder %v226, 0
        %v238 = vsel %vm236, 0.0, %v235
        %v239 = vsel %vm237, 0.0, %v234
        %vm240 = vcmask 1047680
        %241 = vrot.lane.b32.xlu0 %v238, 16
        %v242 = vpop.permute.xlu0 %241
        %v243 = vsel %vm240, %v242, %v238
        %244 = vrot.lane.b32.xlu0 %v239, 16
        %v245 = vpop.permute.xlu0 %244
        %v246 = vsel %vm240, %v245, %v239
        %247 = vrot.lane.b32.xlu0 %v243, 16
        %v248 = vpop.permute.xlu0 %247
        %249 = vrot.lane.b32.xlu0 %v246, 16
        %v250 = vpop.permute.xlu0 %249
        %v251 = vsel %vm240, %v248, %v238
        %v252 = vsel %vm240, %v250, %v239
        %vm253 = vcmp.eq.s32.totalorder %v228, 0
        %256 = vrot.lane.b32.xlu0 %v251, 113
        %v257 = vpop.permute.xlu0 %256
        %258 = vrot.lane.b32.xlu0 %v252, 113
        %v259 = vpop.permute.xlu0 %258
        %v262 = vsel %vm253, 0.0, %v257
        %v263 = vsel %vm253, 0.0, %v259
        %v264 = vstv %s229
        %v265 = vmul.f32 %v264, %v262
        %v266 = vmul.f32 %v264, %v263
        %v267 = vadd.f32 %v265, 0.0
        %v268 = vadd.f32 %v266, 0.0
        %v269 = vrot.slane %v216, 7
        %v270 = vrot.slane %v223, 7
        %v271 = vsel %vm233, %v269, %v270
        %v272 = vsel %vm233, %v270, %v269
        %v273 = vsel %vm236, 0.0, %v272
        %v274 = vsel %vm237, 0.0, %v271
        %275 = vrot.lane.b32.xlu0 %v273, 16
        %v276 = vpop.permute.xlu0 %275
        %v277 = vsel %vm240, %v276, %v273
        %278 = vrot.lane.b32.xlu0 %v274, 16
        %v279 = vpop.permute.xlu0 %278
        %v280 = vsel %vm240, %v279, %v274
        %281 = vrot.lane.b32.xlu0 %v277, 16
        %v282 = vpop.permute.xlu0 %281
        %283 = vrot.lane.b32.xlu0 %v280, 16
        %v284 = vpop.permute.xlu0 %283
        %v285 = vsel %vm240, %v282, %v273
        %v286 = vsel %vm240, %v284, %v274
        %289 = vrot.lane.b32.xlu0 %v285, 113
        %v290 = vpop.permute.xlu0 %289
        %291 = vrot.lane.b32.xlu0 %v286, 113
        %v292 = vpop.permute.xlu0 %291
        %v295 = vsel %vm253, 0.0, %v290
        %v296 = vsel %vm253, 0.0, %v292
        %v297 = vstv %s230
        %v298 = vmul.f32 %v297, %v295
        %v299 = vmul.f32 %v297, %v296
        %v300 = vadd.f32 %v267, %v298
        %v301 = vadd.f32 %v268, %v299
        %s302 = sld [smem:[#allocation2 + $0x1]]
        %s303 = sld [smem:[#allocation2 + $0xa]]
        %v304 = vstv %s302
        %v305 = vmul.f32 %v304, %v238
        %v306 = vmul.f32 %v304, %v239
        %v307 = vadd.f32 %v300, %v305
        %v308 = vadd.f32 %v301, %v306
        %v309 = vstv %s303
        %v310 = vmul.f32 %v309, %v273
        %v311 = vmul.f32 %v309, %v274
        %v312 = vadd.f32 %v307, %v310
        %v313 = vadd.f32 %v308, %v311
        %s314 = sld [smem:[#allocation2 + $0x2]]
        %s315 = sld [smem:[#allocation2 + $0xb]]
        %vm316 = vcmp.eq.s32.totalorder %v228, 15
        %317 = vrot.lane.b32.xlu0 %v251, 127
        %v318 = vpop.permute.xlu0 %317
        %319 = vrot.lane.b32.xlu0 %v252, 127
        %v320 = vpop.permute.xlu0 %319
        %v323 = vsel %vm316, 0.0, %v318
        %v324 = vsel %vm316, 0.0, %v320
        %v325 = vstv %s314
        %v326 = vmul.f32 %v325, %v323
        %v327 = vmul.f32 %v325, %v324
        %v328 = vadd.f32 %v312, %v326
        %v329 = vadd.f32 %v313, %v327
        %330 = vrot.lane.b32.xlu0 %v285, 127
        %v331 = vpop.permute.xlu0 %330
        %332 = vrot.lane.b32.xlu0 %v286, 127
        %v333 = vpop.permute.xlu0 %332
        %v336 = vsel %vm316, 0.0, %v331
        %v337 = vsel %vm316, 0.0, %v333
        %v338 = vstv %s315
        %v339 = vmul.f32 %v338, %v336
        %v340 = vmul.f32 %v338, %v337
        %v341 = vadd.f32 %v328, %v339
        %v342 = vadd.f32 %v329, %v340
        %s343 = sld [smem:[#allocation2 + $0x3]]
        %s344 = sld [smem:[#allocation2 + $0xc]]
        %345 = vrot.lane.b32.xlu0 %v208, 16
        %v346 = vpop.permute.xlu0 %345
        %v347 = vsel %vm240, %v346, %v208
        %348 = vrot.lane.b32.xlu0 %v209, 16
        %v349 = vpop.permute.xlu0 %348
        %v350 = vsel %vm240, %v349, %v209
        %351 = vrot.lane.b32.xlu0 %v347, 16
        %v352 = vpop.permute.xlu0 %351
        %353 = vrot.lane.b32.xlu0 %v350, 16
        %v354 = vpop.permute.xlu0 %353
        %v355 = vsel %vm240, %v352, %v208
        %v356 = vsel %vm240, %v354, %v209
        %359 = vrot.lane.b32.xlu0 %v355, 113
        %v360 = vpop.permute.xlu0 %359
        %361 = vrot.lane.b32.xlu0 %v356, 113
        %v362 = vpop.permute.xlu0 %361
        %v365 = vsel %vm253, 0.0, %v360
        %v366 = vsel %vm253, 0.0, %v362
        %v367 = vstv %s343
        %v368 = vmul.f32 %v367, %v365
        %v369 = vmul.f32 %v367, %v366
        %v370 = vadd.f32 %v341, %v368
        %v371 = vadd.f32 %v342, %v369
        %372 = vrot.lane.b32.xlu0 %v216, 16
        %v373 = vpop.permute.xlu0 %372
        %v374 = vsel %vm240, %v373, %v216
        %375 = vrot.lane.b32.xlu0 %v223, 16
        %v376 = vpop.permute.xlu0 %375
        %v377 = vsel %vm240, %v376, %v223
        %378 = vrot.lane.b32.xlu0 %v374, 16
        %v379 = vpop.permute.xlu0 %378
        %380 = vrot.lane.b32.xlu0 %v377, 16
        %v381 = vpop.permute.xlu0 %380
        %v382 = vsel %vm240, %v379, %v216
        %v383 = vsel %vm240, %v381, %v223
        %386 = vrot.lane.b32.xlu0 %v382, 113
        %v387 = vpop.permute.xlu0 %386
        %388 = vrot.lane.b32.xlu0 %v383, 113
        %v389 = vpop.permute.xlu0 %388
        %v392 = vsel %vm253, 0.0, %v387
        %v393 = vsel %vm253, 0.0, %v389
        %v394 = vstv %s344
        %v395 = vmul.f32 %v394, %v392
        %v396 = vmul.f32 %v394, %v393
        %v397 = vadd.f32 %v370, %v395
        %v398 = vadd.f32 %v371, %v396
        %s399 = sld [smem:[#allocation2 + $0x4]]
        %s400 = sld [smem:[#allocation2 + $0xd]]
        %v401 = vstv %s399
        %v402 = vmul.f32 %v401, %v208
        %v403 = vmul.f32 %v401, %v209
        %v404 = vadd.f32 %v397, %v402
        %v405 = vadd.f32 %v398, %v403
        %v406 = vstv %s400
        %v407 = vmul.f32 %v406, %v216
        %v408 = vmul.f32 %v406, %v223
        %v409 = vadd.f32 %v404, %v407
        %v410 = vadd.f32 %v405, %v408
        %s411 = sld [smem:[#allocation2 + $0x5]]
        %s412 = sld [smem:[#allocation2 + $0xe]]
        %413 = vrot.lane.b32.xlu0 %v355, 127
        %v414 = vpop.permute.xlu0 %413
        %415 = vrot.lane.b32.xlu0 %v356, 127
        %v416 = vpop.permute.xlu0 %415
        %v419 = vsel %vm316, 0.0, %v414
        %v420 = vsel %vm316, 0.0, %v416
        %v421 = vstv %s411
        %v422 = vmul.f32 %v421, %v419
        %v423 = vmul.f32 %v421, %v420
        %v424 = vadd.f32 %v409, %v422
        %v425 = vadd.f32 %v410, %v423
        %426 = vrot.lane.b32.xlu0 %v382, 127
        %v427 = vpop.permute.xlu0 %426
        %428 = vrot.lane.b32.xlu0 %v383, 127
        %v429 = vpop.permute.xlu0 %428
        %v432 = vsel %vm316, 0.0, %v427
        %v433 = vsel %vm316, 0.0, %v429
        %v434 = vstv %s412
        %v435 = vmul.f32 %v434, %v432
        %v436 = vmul.f32 %v434, %v433
        %v437 = vadd.f32 %v424, %v435
        %v438 = vadd.f32 %v425, %v436
        %s439 = sld [smem:[#allocation2 + $0x6]]
        %s440 = sld [smem:[#allocation2 + $0xf]]
        %v441 = vrot.slane %v208, 1
        %v442 = vrot.slane %v209, 1
        %vm443 = vcmp.lt.s32.totalorder %v225, 7
        %v444 = vsel %vm443, %v441, %v442
        %v445 = vsel %vm443, %v442, %v441
        %vm446 = vcmp.eq.s32.totalorder %v225, 15
        %vm447 = vcmp.eq.s32.totalorder %v226, 15
        %v448 = vsel %vm446, 0.0, %v444
        %v449 = vsel %vm447, 0.0, %v445
        %450 = vrot.lane.b32.xlu0 %v448, 16
        %v451 = vpop.permute.xlu0 %450
        %v452 = vsel %vm240, %v451, %v448
        %453 = vrot.lane.b32.xlu0 %v449, 16
        %v454 = vpop.permute.xlu0 %453
        %v455 = vsel %vm240, %v454, %v449
        %456 = vrot.lane.b32.xlu0 %v452, 16
        %v457 = vpop.permute.xlu0 %456
        %458 = vrot.lane.b32.xlu0 %v455, 16
        %v459 = vpop.permute.xlu0 %458
        %v460 = vsel %vm240, %v457, %v448
        %v461 = vsel %vm240, %v459, %v449
        %464 = vrot.lane.b32.xlu0 %v460, 113
        %v465 = vpop.permute.xlu0 %464
        %466 = vrot.lane.b32.xlu0 %v461, 113
        %v467 = vpop.permute.xlu0 %466
        %v470 = vsel %vm253, 0.0, %v465
        %v471 = vsel %vm253, 0.0, %v467
        %v472 = vstv %s439
        %v473 = vmul.f32 %v472, %v470
        %v474 = vmul.f32 %v472, %v471
        %v475 = vadd.f32 %v437, %v473
        %v476 = vadd.f32 %v438, %v474
        %v477 = vrot.slane %v216, 1
        %v478 = vrot.slane %v223, 1
        %v479 = vsel %vm443, %v477, %v478
        %v480 = vsel %vm443, %v478, %v477
        %v481 = vsel %vm446, 0.0, %v479
        %v482 = vsel %vm447, 0.0, %v480
        %483 = vrot.lane.b32.xlu0 %v481, 16
        %v484 = vpop.permute.xlu0 %483
        %v485 = vsel %vm240, %v484, %v481
        %486 = vrot.lane.b32.xlu0 %v482, 16
        %v487 = vpop.permute.xlu0 %486
        %v488 = vsel %vm240, %v487, %v482
        %489 = vrot.lane.b32.xlu0 %v485, 16
        %v490 = vpop.permute.xlu0 %489
        %491 = vrot.lane.b32.xlu0 %v488, 16
        %v492 = vpop.permute.xlu0 %491
        %v493 = vsel %vm240, %v490, %v481
        %v494 = vsel %vm240, %v492, %v482
        %497 = vrot.lane.b32.xlu0 %v493, 113
        %v498 = vpop.permute.xlu0 %497
        %499 = vrot.lane.b32.xlu0 %v494, 113
        %v500 = vpop.permute.xlu0 %499
        %v503 = vsel %vm253, 0.0, %v498
        %v504 = vsel %vm253, 0.0, %v500
        %v505 = vstv %s440
        %v506 = vmul.f32 %v505, %v503
        %v507 = vmul.f32 %v505, %v504
        %v508 = vadd.f32 %v475, %v506
        %v509 = vadd.f32 %v476, %v507
        %s510 = sld [smem:[#allocation2 + $0x7]]
        %s511 = sld [smem:[#allocation2 + $0x10]]
        %v512 = vstv %s510
        %v513 = vmul.f32 %v512, %v448
        %v514 = vmul.f32 %v512, %v449
        %v515 = vadd.f32 %v508, %v513
        %v516 = vadd.f32 %v509, %v514
        %v517 = vstv %s511
        %v518 = vmul.f32 %v517, %v481
        %v519 = vmul.f32 %v517, %v482
        %v520 = vadd.f32 %v515, %v518
        %v521 = vadd.f32 %v516, %v519
        %s522 = sld [smem:[#allocation2 + $0x8]]
        %s523 = sld [smem:[#allocation2 + $0x11]]
        %524 = vrot.lane.b32.xlu0 %v460, 127
        %v525 = vpop.permute.xlu0 %524
        %526 = vrot.lane.b32.xlu0 %v461, 127
        %v527 = vpop.permute.xlu0 %526
        %v530 = vsel %vm316, 0.0, %v525
        %v531 = vsel %vm316, 0.0, %v527
        %v532 = vstv %s522
        %v533 = vmul.f32 %v532, %v530
        %v534 = vmul.f32 %v532, %v531
        %v535 = vadd.f32 %v520, %v533
        %v536 = vadd.f32 %v521, %v534
        %537 = vrot.lane.b32.xlu0 %v493, 127
        %v538 = vpop.permute.xlu0 %537
        %539 = vrot.lane.b32.xlu0 %v494, 127
        %v540 = vpop.permute.xlu0 %539
        %v543 = vsel %vm316, 0.0, %v538
        %v544 = vsel %vm316, 0.0, %v540
        %v545 = vstv %s523
        %v546 = vmul.f32 %v545, %v543
        %v547 = vmul.f32 %v545, %v544
        %v548 = vadd.f32 %v535, %v546
        %v549 = vadd.f32 %v536, %v547
        %550 = vst.msk [vmem:[%s177] sm:$0xff] %vm186, %v548
        %551 = vst.msk [vmem:[%s177 + $0x8] sm:$0xff] %vm186, %v549
        %s552 = sand.u32 %s75, 1
        %s553 = scalar_lea.sflag [#allocation4], %s552
        %s554 = sand.u32 %s75, 1
        %s555 = smul.addr %s554, 16
        %s556 = scalar_lea.vmem [#allocation7], %s555
        // Predicated region
        $region37: #{tpu_custom_call.1} parent=27 // pred_check
          %p557 = pneg %p85
        $region38: #{tpu_custom_call.1} parent=27 // pred_check_branch
          %559 = sbr.rel (%p557) target = $region40
        $region39: #{tpu_custom_call.1} parent=27 // pred_region
          %561 = vsyncadd %s553, 0
          %s562 = smul.addr %s20, 2
          %s563 = smul.addr %s562, 8
          %s564 = scalar_lea.hbm %s2, %s563
          %s565 = sshll.u32 %s556, 4
          %s566 = int_to_ptr.vmem [resolvable:$true] %s565
          %s567 = sshll.u32 %s564, 4
          %s568 = int_to_ptr.hbm [resolvable:$true] %s567
          %573 = dma.vmem_to_hbm [thread:$0]  %s566, 256, %s568, %s553, 128, 128, 8
        $region40: #{tpu_custom_call.1} parent=27 // pred_fallthru
          _
      $region28: #{tpu_custom_call.1} parent=5 // pred_fallthru
        _
      %p574 = scmp.le.s32.totalorder 2, %s15
      // Predicated region
      $region41: #{tpu_custom_call.1} parent=5 // pred_check
        %p575 = pneg %p574
      $region42: #{tpu_custom_call.1} parent=5 // pred_check_branch
        %577 = sbr.rel (%p575) target = $region44
      $region43: #{tpu_custom_call.1} parent=5 // pred_region
        %s578 = ssub.s32 %s15, 2
        // Predicated region
        $region45: #{tpu_custom_call.1} parent=43 // pred_check
          %p579 = pneg %p91
        $region46: #{tpu_custom_call.1} parent=43 // pred_check_branch
          %581 = sbr.rel (%p579) target = $region48
        $region47: #{tpu_custom_call.1} parent=43 // pred_region
          %s582 = sand.u32 %s76, 1
          %s583 = scalar_lea.sflag [#allocation4], %s582
          %s584 = sand.u32 %s76, 1
          %s585 = smul.addr %s584, 16
          %s586 = scalar_lea.vmem [#allocation7], %s585
          %588 = dma.done %s583, 256
        $region48: #{tpu_custom_call.1} parent=43 // pred_fallthru
          _
      $region44: #{tpu_custom_call.1} parent=5 // pred_fallthru
        _
    $region6: #{tpu_custom_call.1} parent=1 // loop_footer
      %s19 = sadd.s32 1, %s15
    $region7: #{tpu_custom_call.1} parent=1 // loop_footer_branch
      %14 = sbr.rel target = $region3
    $region8: #{tpu_custom_call.1} parent=1 // loop_exit
      _
    %589 = vsyncpa [#allocation3], 1
    %s590 = scalar_lea.sflag [#allocation3], 1
    %591 = vsyncpa %s590, 1
    %592 = vsyncpa [#allocation4], 1
    %s593 = scalar_lea.sflag [#allocation4], 1
    %594 = vsyncpa %s593, 1
    %595 = vsyncpa [#allocation5], 1
    %s596 = scalar_lea.sflag [#allocation5], 1
    %597 = vsyncpa %s596, 1

</llo_original>
